<compile_context>
chip_gen: v7x
topology: tpu7x:2x2x1
jax: 0.10.0
libtpu: 0.0.40
codegen_flags: <defaults>
</compile_context>

<pallas_src>
import functools

import jax
import jax.numpy as jnp
from jax.experimental import pallas as pl
from jax.experimental.pallas import tpu as pltpu

LANE = 128
SUBLANE_BF16 = 16


def _round_up(x, m):
    return (x + m - 1) // m * m


def _pad_to(a, shape):
    pads = [(0, t - s) for s, t in zip(a.shape, shape)]
    return jnp.pad(a, pads)


def _activation(name, x):
    if name == "relu":
        return jnp.maximum(x, 0.0)
    if name == "gelu":
        # tanh-approximate GELU -> EUP slot, not a long erf polynomial on the
        # VALU (tiny numeric deviation from torch's exact-erf nn.GELU()).
        return jax.nn.gelu(x, approximate=True)
    if name == "tanh":
        return jnp.tanh(x)
    if name == "sigmoid":
        return jax.nn.sigmoid(x)
    raise ValueError(f"Unsupported activation type: {name}")


def _vmem_limit(needed_bytes):
    """Generation-aware scoped-VMEM limit (~85% of physical VMEM per core)."""
    cap = 64 << 20  # conservative fallback = v7x per-TC capacity
    try:
        info = pltpu.get_tpu_info()
        cap = int(getattr(info, "vmem_capacity_bytes", cap) or cap)
    except Exception:
        pass
    cap = int(cap * 0.85)                 # headroom (v7x: ~54 MiB, v5e/v6e: ~108 MiB)
    return int(min(cap, max(needed_bytes, 32 << 20)))


def _choose_tile_n(n_rows, target):
    """Row tile: multiple of 16 (bf16 packing), capped by `target`, and split
    so the parallel row axis has >= 2 grid steps when the batch allows it
    (v7x megacore would otherwise leave one TensorCore idle)."""
    tn = max(SUBLANE_BF16, min(_round_up(target, SUBLANE_BF16),
                               _round_up(n_rows, SUBLANE_BF16)))
    if n_rows >= 2 * SUBLANE_BF16 and pl.cdiv(n_rows, tn) < 2:
        tn = max(SUBLANE_BF16, _round_up(pl.cdiv(n_rows, 2), SUBLANE_BF16))
    return tn


# ---------------------------------------------------------------------------
# Kernels
# ---------------------------------------------------------------------------

def _mlp_kernel(x_ref, w0_ref, b0_ref, wh_ref, bh_ref, wf_ref, bf_ref,
                o_ref, h_ref, *, activation, act_dtype):
    """One (row-tile, hidden-layer) grid step.

    Grid = (rows, n_hidden).  The hidden-layer axis is 'arbitrary' and streams
    one (d_p, d_p) weight block per step while h is carried in VMEM scratch.
    Layer 0 (Linear(in_features, d_hidden)) runs under pl.when(l == 0); the
    final Linear(d_hidden, n_classes) under pl.when(l == last).
    Dropout is identity (eval / p = 0).
    """
    l = pl.program_id(1)

    @pl.when(l == 0)
    def _():
        h0 = jnp.dot(x_ref[...], w0_ref[...],
                     preferred_element_type=jnp.float32) + b0_ref[...]
        h_ref[...] = _activation(activation, h0.astype(act_dtype)).astype(h_ref.dtype)

    h = jnp.dot(h_ref[...], wh_ref[0],
                preferred_element_type=jnp.float32) + bh_ref[0]
    h_ref[...] = _activation(activation, h.astype(act_dtype)).astype(h_ref.dtype)

    @pl.when(l == pl.num_programs(1) - 1)
    def _():
        o_ref[...] = (jnp.dot(h_ref[...], wf_ref[...],
                              preferred_element_type=jnp.float32)
                      + bf_ref[...]).astype(o_ref.dtype)


def _linear_kernel(x_ref, w_ref, b_ref, o_ref):
    """n_hidden == 0 path: a single Linear(in_features, n_classes)."""
    o_ref[...] = (jnp.dot(x_ref[...], w_ref[...],
                          preferred_element_type=jnp.float32)
                  + b_ref[...]).astype(o_ref.dtype)


# ---------------------------------------------------------------------------
# Params
# ---------------------------------------------------------------------------

def init_params(key, in_features, n_classes, n_hidden, d_hidden,
                dtype=jnp.float32):
    """PyTorch-style nn.Linear init: U(-1/sqrt(fan_in), +1/sqrt(fan_in))."""
    def linear(k, fan_in, fan_out):
        kw, kb = jax.random.split(k)
        bound = 1.0 / jnp.sqrt(jnp.asarray(fan_in, dtype))
        w = jax.random.uniform(kw, (fan_in, fan_out), dtype, -bound, bound)
        b = jax.random.uniform(kb, (1, fan_out), dtype, -bound, bound)
        return w, b

    if n_hidden == 0:
        w, b = linear(key, in_features, n_classes)
        return {"w": w, "b": b}

    keys = jax.random.split(key, 2 + n_hidden)
    w0, b0 = linear(keys[0], in_features, n_hidden)
    wh, bh = [], []
    for i in range(n_hidden):
        w, b = linear(keys[1 + i], d_hidden, d_hidden)
        wh.append(w)
        bh.append(b)
    wf, bf = linear(keys[-1], d_hidden, n_classes)
    return {"w0": w0, "b0": b0, "wh": jnp.stack(wh), "bh": jnp.stack(bh),
            "wf": wf, "bf": bf}


def prepare_params(params, *, compute_dtype=jnp.bfloat16):
    """Pad (lane-align) + cast the weights ONCE; reuse the result every call.

    Weights are ZERO-padded so padded hidden lanes / classes never leak into
    valid outputs (padded *rows* of the next layer's weights are exactly zero),
    and cast to the MXU feed dtype.  Biases stay f32 (added to the f32
    accumulator).  Returns (prepared_params, n_classes).
    """
    if "w" in params:                       # n_hidden == 0
        in_f, n_cls = params["w"].shape
        n_cls_p = _round_up(n_cls, LANE)
        prep = {"w": _pad_to(params["w"], (in_f, n_cls_p)).astype(compute_dtype),
                "b": _pad_to(params["b"].astype(jnp.float32), (1, n_cls_p))}
        return prep, n_cls

    in_f, n_hidden = params["w0"].shape
    d_hidden = params["wf"].shape[0]
    n_cls = params["wf"].shape[1]
    assert n_hidden == d_hidden and params["wh"].shape[0] == n_hidden, (
        "PredictionHead's n_hidden>0 branch requires n_hidden == d_hidden")
    d_p = _round_up(d_hidden, LANE)
    n_cls_p = _round_up(n_cls, LANE)
    prep = {
        "w0": _pad_to(params["w0"], (in_f, d_p)).astype(compute_dtype),
        "b0": _pad_to(params["b0"].astype(jnp.float32), (1, d_p)),
        "wh": _pad_to(params["wh"], (n_hidden, d_p, d_p)).astype(compute_dtype),
        "bh": _pad_to(params["bh"].astype(jnp.float32), (n_hidden, 1, d_p)),
        "wf": _pad_to(params["wf"], (d_p, n_cls_p)).astype(compute_dtype),
        "bf": _pad_to(params["bf"].astype(jnp.float32), (1, n_cls_p)),
    }
    return prep, n_cls


# ---------------------------------------------------------------------------
# Forward
# ---------------------------------------------------------------------------

def prediction_head_forward(x, prepared_params, *, n_hidden, n_classes,
                            activation, tile_n=512,
                            compute_dtype=jnp.bfloat16, act_dtype=None):
    """Forward pass.  `prepared_params` must come from prepare_params() with
    the same compute_dtype.  act_dtype defaults to compute_dtype (bf16 VPU/EUP
    on v6e/v7x); pass jnp.float32 on v5e."""
    N, in_f = x.shape
    out_dtype = x.dtype
    act_dtype = compute_dtype if act_dtype is None else act_dtype
    xc = x.astype(compute_dtype)       # halve x DMA/VMEM; kernel truncates anyway
    cbytes = jnp.dtype(compute_dtype).itemsize
    obytes = jnp.dtype(out_dtype).itemsize

    tn = _choose_tile_n(N, tile_n)
    n_row_steps = pl.cdiv(N, tn)       # ragged final block: no row padding of x

    if n_hidden == 0:
        w, b = prepared_params["w"], prepared_params["b"]
        n_cls_p = w.shape[1]
        flops = 2 * N * in_f * n_cls_p
        bytes_accessed = int(N * in_f * cbytes + w.size * cbytes + b.size * 4
                             + N * n_cls_p * obytes)
        needed = (2 * (tn * in_f * cbytes + tn * n_cls_p * obytes)   # x/out dbl-buffered
                  + 2 * (w.size * cbytes + b.size * 4)               # resident weights (2 bufs)
                  + tn * n_cls_p * 4                                 # f32 accumulator temp
                  + (2 << 20))
        out_p = pl.pallas_call(
            _linear_kernel,
            out_shape=jax.ShapeDtypeStruct((N, n_cls_p), out_dtype),
            grid=(n_row_steps,),
            in_specs=[pl.BlockSpec((tn, in_f), lambda i: (i, 0)),
                      pl.BlockSpec((in_f, n_cls_p), lambda i: (0, 0)),
                      pl.BlockSpec((1, n_cls_p), lambda i: (0, 0))],
            out_specs=pl.BlockSpec((tn, n_cls_p), lambda i: (i, 0)),
            compiler_params=pltpu.CompilerParams(
                dimension_semantics=("parallel",),
                vmem_limit_bytes=_vmem_limit(needed)),
            cost_estimate=pl.CostEstimate(flops=flops, transcendentals=0,
                                          bytes_accessed=bytes_accessed),
        )(xc, w, b)
        return out_p[:, :n_classes]

    w0, b0 = prepared_params["w0"], prepared_params["b0"]
    wh, bh = prepared_params["wh"], prepared_params["bh"]
    wf, bf = prepared_params["wf"], prepared_params["bf"]
    d_p = w0.shape[1]
    n_cls_p = wf.shape[1]

    # TODO(synk): K-tile layer 0 (x block (tn, tk), extra "arbitrary" K axis,
    # f32 scratch accumulator) when in_features is very large (> ~2048) so the
    # x tile and w0 stop dominating VMEM.
    # TODO(synk): request single-buffering (pipeline_mode=pl.Buffered(1)) for
    # the constant-index w0/b0/wf/bf blocks once verified on the installed
    # Pallas; with wh streamed per-layer these residents are small, so the
    # VMEM budget below conservatively counts 2 buffers for them.

    flops = 2 * N * (in_f * d_p + n_hidden * d_p * d_p + d_p * n_cls_p)
    transc = N * d_p * (1 + n_hidden) if activation != "relu" else 0
    bytes_accessed = int(N * in_f * cbytes
                         + (w0.size + wh.size + wf.size) * cbytes
                         + (b0.size + bh.size + bf.size) * 4
                         + N * n_cls_p * obytes)
    needed = (2 * (tn * in_f * cbytes + tn * n_cls_p * obytes)       # x / out, dbl-buffered
              + 2 * (w0.size * cbytes + b0.size * 4
                     + wf.size * cbytes + bf.size * 4)               # resident consts
              + 2 * (d_p * d_p * cbytes + d_p * 4)                   # streamed wh/bh layer
              + tn * d_p * cbytes                                    # h carry scratch
              + 2 * tn * d_p * 4                                     # live f32 temps
              + (2 << 20))

    out_p = pl.pallas_call(
        functools.partial(_mlp_kernel, activation=activation, act_dtype=act_dtype),
        out_shape=jax.ShapeDtypeStruct((N, n_cls_p), out_dtype),
        grid=(n_row_steps, n_hidden),
        in_specs=[pl.BlockSpec((tn, in_f),     lambda i, l: (i, 0)),   # x
                  pl.BlockSpec((in_f, d_p),    lambda i, l: (0, 0)),   # w0 (resident)
                  pl.BlockSpec((1, d_p),       lambda i, l: (0, 0)),   # b0
                  pl.BlockSpec((1, d_p, d_p),  lambda i, l: (l, 0, 0)),  # wh (streamed)
                  pl.BlockSpec((1, 1, d_p),    lambda i, l: (l, 0, 0)),  # bh (streamed)
                  pl.BlockSpec((d_p, n_cls_p), lambda i, l: (0, 0)),   # wf (resident)
                  pl.BlockSpec((1, n_cls_p),   lambda i, l: (0, 0))],  # bf
        out_specs=pl.BlockSpec((tn, n_cls_p), lambda i, l: (i, 0)),
        scratch_shapes=[pltpu.VMEM((tn, d_p), compute_dtype)],
        compiler_params=pltpu.CompilerParams(
            dimension_semantics=("parallel", "arbitrary"),
            vmem_limit_bytes=_vmem_limit(needed)),
        cost_estimate=pl.CostEstimate(flops=flops, transcendentals=transc,
                                      bytes_accessed=bytes_accessed),
    )(xc, w0, b0, wh, bh, wf, bf)
    return out_p[:, :n_classes]


# ---------------------------------------------------------------------------
# Pure-JAX reference (mirrors the PyTorch forward; dropout = identity).
# compute_dtype=None        -> exact f32 math
# compute_dtype/act_dtype   -> mirrors the kernel (bf16 MXU feeds, f32
#                              accumulation, bf16 activation math)
# ---------------------------------------------------------------------------

def prediction_head_reference(x, params, *, n_hidden, activation,
                              compute_dtype=None, act_dtype=None):
    def mm(a, w):
        if compute_dtype is not None:
            a = a.astype(compute_dtype)
            w = w.astype(compute_dtype)
        return jnp.dot(a, w, preferred_element_type=jnp.float32)

    def act(h):
        if act_dtype is not None:
            h = h.astype(act_dtype)
        return _activation(activation, h)

    if n_hidden == 0:
        return (mm(x, params["w"]) + params["b"]).astype(x.dtype)
    h = act(mm(x, params["w0"]) + params["b0"])
    for i in range(n_hidden):
        h = act(mm(h, params["wh"][i]) + params["bh"][i])
    return (mm(h, params["wf"]) + params["bf"]).astype(x.dtype)


if __name__ == "__main__":
    # Small, shape-consistent config (n_hidden must equal d_hidden).
    in_features = 32
    n_classes = 10
    n_hidden = 8
    d_hidden = 8
    activation = "tanh"
    N = 50  # ragged batch: 2 row tiles (>=2 parallel steps), last one partial

    key = jax.random.PRNGKey(0)
    kx, kp, kp0 = jax.random.split(key, 3)
    x = jax.random.normal(kx, (N, in_features), jnp.float32)

    # --- MLP path (n_hidden > 0) ---
    raw = init_params(kp, in_features, n_classes, n_hidden, d_hidden)
    prep, ncls = prepare_params(raw)          # pad / cast ONCE, reuse per call
    out = prediction_head_forward(x, prep, n_hidden=n_hidden, n_classes=ncls,
                                  activation=activation)
    out = jax.block_until_ready(out)
    assert out.shape == (N, n_classes), out.shape

    ref_bf16 = prediction_head_reference(x, raw, n_hidden=n_hidden,
                                         activation=activation,
                                         compute_dtype=jnp.bfloat16,
                                         act_dtype=jnp.bfloat16)
    assert jnp.allclose(out, ref_bf16, rtol=2e-2, atol=2e-2), \
        float(jnp.max(jnp.abs(out - ref_bf16)))

    ref_f32 = prediction_head_reference(x, raw, n_hidden=n_hidden,
                                        activation=activation)
    assert jnp.allclose(out, ref_f32, rtol=6e-2, atol=6e-2), \
        float(jnp.max(jnp.abs(out - ref_f32)))

    # --- single-Linear path (n_hidden == 0) ---
    raw0 = init_params(kp0, in_features, n_classes, 0, d_hidden)
    prep0, ncls0 = prepare_params(raw0)
    out0 = prediction_head_forward(x, prep0, n_hidden=0, n_classes=ncls0,
                                   activation=activation)
    out0 = jax.block_until_ready(out0)
    assert out0.shape == (N, n_classes), out0.shape
    ref0 = prediction_head_reference(x, raw0, n_hidden=0, activation=activation,
                                     compute_dtype=jnp.bfloat16)
    assert jnp.allclose(out0, ref0, rtol=2e-2, atol=2e-2), \
        float(jnp.max(jnp.abs(out0 - ref0)))

    print("KERNEL_OK")
</pallas_src>

<mosaic_0001>
module attributes {stable_mosaic.version = 11 : i64} {
  func.func @_mlp_kernel(%arg0: i32, %arg1: i32, %arg2: memref<32x32xbf16, #tpu.memory_space<vmem>>, %arg3: memref<32x128xbf16, #tpu.memory_space<vmem>>, %arg4: memref<1x128xf32, #tpu.memory_space<vmem>>, %arg5: memref<1x128x128xbf16, #tpu.memory_space<vmem>>, %arg6: memref<1x1x128xf32, #tpu.memory_space<vmem>>, %arg7: memref<128x128xbf16, #tpu.memory_space<vmem>>, %arg8: memref<1x128xf32, #tpu.memory_space<vmem>>, %arg9: memref<32x128xf32, #tpu.memory_space<vmem>>, %arg10: memref<32x128xbf16, #tpu.memory_space<vmem>>) attributes {dimension_semantics = [#tpu.dimension_semantics<parallel>, #tpu.dimension_semantics<arbitrary>], iteration_bounds = array<i64: 2, 8>, scalar_prefetch = 0 : i64, scratch_operands = 1 : i64, tpu.core_type = #tpu.core_type<tc>, window_params = [{transform_indices = @transform_0, window_bounds = array<i64: 32, 32>}, {pipeline_mode = #tpu.pipeline_mode<synchronous>, transform_indices = @transform_1, window_bounds = array<i64: 32, 128>}, {pipeline_mode = #tpu.pipeline_mode<synchronous>, transform_indices = @transform_2, window_bounds = array<i64: 1, 128>}, {transform_indices = @transform_3, window_bounds = array<i64: 1, 128, 128>}, {transform_indices = @transform_4, window_bounds = array<i64: 1, 1, 128>}, {pipeline_mode = #tpu.pipeline_mode<synchronous>, transform_indices = @transform_5, window_bounds = array<i64: 128, 128>}, {pipeline_mode = #tpu.pipeline_mode<synchronous>, transform_indices = @transform_6, window_bounds = array<i64: 1, 128>}, {transform_indices = @transform_7, window_bounds = array<i64: 32, 128>}]} {
    %c0_i32 = arith.constant 0 : i32
    %0 = arith.cmpi eq, %arg1, %c0_i32 : i32
    %1 = arith.extui %0 : i1 to i32
    %c0_i32_0 = arith.constant 0 : i32
    %2 = arith.cmpi ne, %1, %c0_i32_0 : i32
    scf.if %2 {
      %c0_11 = arith.constant 0 : index
      %c0_12 = arith.constant 0 : index
      %17 = vector.load %arg2[%c0_11, %c0_12] : memref<32x32xbf16, #tpu.memory_space<vmem>>, vector<32x32xbf16>
      %c0_13 = arith.constant 0 : index
      %c0_14 = arith.constant 0 : index
      %18 = vector.load %arg3[%c0_13, %c0_14] : memref<32x128xbf16, #tpu.memory_space<vmem>>, vector<32x128xbf16>
      %cst_15 = arith.constant dense<0.000000e+00> : vector<32x128xf32>
      %19 = tpu.matmul %17, %18, %cst_15 {dimension_numbers = #tpu.dot_dimension_numbers<[1], [0], [0], [1], [0, 0, 1, 1], [], []>} : vector<32x32xbf16>, vector<32x128xbf16>, vector<32x128xf32> -> vector<32x128xf32>
      %c0_16 = arith.constant 0 : index
      %c0_17 = arith.constant 0 : index
      %20 = vector.load %arg4[%c0_16, %c0_17] : memref<1x128xf32, #tpu.memory_space<vmem>>, vector<1x128xf32>
      %21 = vector.broadcast %20 : vector<1x128xf32> to vector<32x128xf32>
      %22 = arith.addf %19, %21 : vector<32x128xf32>
      %23 = arith.truncf %22 : vector<32x128xf32> to vector<32x128xbf16>
      %24 = math.tanh %23 : vector<32x128xbf16>
      %c0_18 = arith.constant 0 : index
      %c0_19 = arith.constant 0 : index
      %25 = vector.load %arg10[%c0_18, %c0_19] : memref<32x128xbf16, #tpu.memory_space<vmem>>, vector<32x128xbf16>
      tpu.vector_store %arg10[%c0_18, %c0_19], %24 {strides = array<i32>} : memref<32x128xbf16, #tpu.memory_space<vmem>>, vector<32x128xbf16>,
    } else {
    }
    %c0 = arith.constant 0 : index
    %c0_1 = arith.constant 0 : index
    %3 = vector.load %arg10[%c0, %c0_1] : memref<32x128xbf16, #tpu.memory_space<vmem>>, vector<32x128xbf16>
    %c0_2 = arith.constant 0 : index
    %c0_3 = arith.constant 0 : index
    %c0_4 = arith.constant 0 : index
    %4 = vector.load %arg5[%c0_2, %c0_3, %c0_4] : memref<1x128x128xbf16, #tpu.memory_space<vmem>>, vector<1x128x128xbf16>
    %5 = vector.shape_cast %4 : vector<1x128x128xbf16> to vector<128x128xbf16>
    %cst = arith.constant dense<0.000000e+00> : vector<32x128xf32>
    %6 = tpu.matmul %3, %5, %cst {dimension_numbers = #tpu.dot_dimension_numbers<[1], [0], [0], [1], [0, 0, 1, 1], [], []>} : vector<32x128xbf16>, vector<128x128xbf16>, vector<32x128xf32> -> vector<32x128xf32>
    %c0_5 = arith.constant 0 : index
    %c0_6 = arith.constant 0 : index
    %c0_7 = arith.constant 0 : index
    %7 = vector.load %arg6[%c0_5, %c0_6, %c0_7] : memref<1x1x128xf32, #tpu.memory_space<vmem>>, vector<1x1x128xf32>
    %8 = vector.shape_cast %7 : vector<1x1x128xf32> to vector<1x128xf32>
    %9 = vector.broadcast %8 : vector<1x128xf32> to vector<32x128xf32>
    %10 = arith.addf %6, %9 : vector<32x128xf32>
    %11 = arith.truncf %10 : vector<32x128xf32> to vector<32x128xbf16>
    %12 = math.tanh %11 : vector<32x128xbf16>
    %c0_8 = arith.constant 0 : index
    %c0_9 = arith.constant 0 : index
    %13 = vector.load %arg10[%c0_8, %c0_9] : memref<32x128xbf16, #tpu.memory_space<vmem>>, vector<32x128xbf16>
    tpu.vector_store %arg10[%c0_8, %c0_9], %12 {strides = array<i32>} : memref<32x128xbf16, #tpu.memory_space<vmem>>, vector<32x128xbf16>,
    %c7_i32 = arith.constant 7 : i32
    %14 = arith.cmpi eq, %arg1, %c7_i32 : i32
    %15 = arith.extui %14 : i1 to i32
    %c0_i32_10 = arith.constant 0 : i32
    %16 = arith.cmpi ne, %15, %c0_i32_10 : i32
    scf.if %16 {
      %c0_11 = arith.constant 0 : index
      %c0_12 = arith.constant 0 : index
      %17 = vector.load %arg10[%c0_11, %c0_12] : memref<32x128xbf16, #tpu.memory_space<vmem>>, vector<32x128xbf16>
      %c0_13 = arith.constant 0 : index
      %c0_14 = arith.constant 0 : index
      %18 = vector.load %arg7[%c0_13, %c0_14] : memref<128x128xbf16, #tpu.memory_space<vmem>>, vector<128x128xbf16>
      %cst_15 = arith.constant dense<0.000000e+00> : vector<32x128xf32>
      %19 = tpu.matmul %17, %18, %cst_15 {dimension_numbers = #tpu.dot_dimension_numbers<[1], [0], [0], [1], [0, 0, 1, 1], [], []>} : vector<32x128xbf16>, vector<128x128xbf16>, vector<32x128xf32> -> vector<32x128xf32>
      %c0_16 = arith.constant 0 : index
      %c0_17 = arith.constant 0 : index
      %20 = vector.load %arg8[%c0_16, %c0_17] : memref<1x128xf32, #tpu.memory_space<vmem>>, vector<1x128xf32>
      %21 = vector.broadcast %20 : vector<1x128xf32> to vector<32x128xf32>
      %22 = arith.addf %19, %21 : vector<32x128xf32>
      %c0_18 = arith.constant 0 : index
      %c0_19 = arith.constant 0 : index
      %23 = vector.load %arg9[%c0_18, %c0_19] : memref<32x128xf32, #tpu.memory_space<vmem>>, vector<32x128xf32>
      tpu.vector_store %arg9[%c0_18, %c0_19], %22 {strides = array<i32>} : memref<32x128xf32, #tpu.memory_space<vmem>>, vector<32x128xf32>,
    } else {
    }
    return
  }
  func.func @transform_0(%arg0: i32, %arg1: i32) -> (i32, i32) {
    %c0_i32 = arith.constant 0 : i32
    %c0_i32_0 = arith.constant 0 : i32
    return %arg0, %c0_i32 : i32, i32
  }
  func.func @transform_1(%arg0: i32, %arg1: i32) -> (i32, i32) {
    %c0_i32 = arith.constant 0 : i32
    %c0_i32_0 = arith.constant 0 : i32
    %c0_i32_1 = arith.constant 0 : i32
    return %c0_i32, %c0_i32_0 : i32, i32
  }
  func.func @transform_2(%arg0: i32, %arg1: i32) -> (i32, i32) {
    %c0_i32 = arith.constant 0 : i32
    %c0_i32_0 = arith.constant 0 : i32
    %c0_i32_1 = arith.constant 0 : i32
    return %c0_i32, %c0_i32_0 : i32, i32
  }
  func.func @transform_3(%arg0: i32, %arg1: i32) -> (i32, i32, i32) {
    %c0_i32 = arith.constant 0 : i32
    %c0_i32_0 = arith.constant 0 : i32
    %c0_i32_1 = arith.constant 0 : i32
    return %arg1, %c0_i32, %c0_i32_0 : i32, i32, i32
  }
  func.func @transform_4(%arg0: i32, %arg1: i32) -> (i32, i32, i32) {
    %c0_i32 = arith.constant 0 : i32
    %c0_i32_0 = arith.constant 0 : i32
    %c0_i32_1 = arith.constant 0 : i32
    return %arg1, %c0_i32, %c0_i32_0 : i32, i32, i32
  }
  func.func @transform_5(%arg0: i32, %arg1: i32) -> (i32, i32) {
    %c0_i32 = arith.constant 0 : i32
    %c0_i32_0 = arith.constant 0 : i32
    %c0_i32_1 = arith.constant 0 : i32
    return %c0_i32, %c0_i32_0 : i32, i32
  }
  func.func @transform_6(%arg0: i32, %arg1: i32) -> (i32, i32) {
    %c0_i32 = arith.constant 0 : i32
    %c0_i32_0 = arith.constant 0 : i32
    %c0_i32_1 = arith.constant 0 : i32
    return %c0_i32, %c0_i32_0 : i32, i32
  }
  func.func @transform_7(%arg0: i32, %arg1: i32) -> (i32, i32) {
    %c0_i32 = arith.constant 0 : i32
    %c0_i32_0 = arith.constant 0 : i32
    return %arg0, %c0_i32 : i32, i32
  }
}

</mosaic_0001>

<llo_original>
// kernel: tpu_custom_call.1
$region0: #{tpu_custom_call.1}
  #allocation0 [shape = 'u32[]', space=smem, size = 0x4, offset = 0x4, fixed_abs, tag = 'smem constant byte address 0x4 - core index']
  #allocation1 [shape = 'u32[144,128]{1,0:T(1,128)}', space=vmem, size = 0x12000, scoped, tag = 'internal scratch']
  #allocation2 [shape = 'bf16[32,128]{1,0:T(16,128)(2,1)}', space=vmem, size = 0x2000, scoped, tag = 'scratch operand']
  %s0 = inlined_call_operand.vmem [shape: bf16[50,32], index: 0, kind: input, shape index: {}]
  %s1 = inlined_call_operand.vmem [shape: bf16[32,128], index: 1, kind: input, shape index: {}]
  %s2 = inlined_call_operand.vmem [shape: f32[1,128], index: 2, kind: input, shape index: {}]
  %s3 = inlined_call_operand.hbm [shape: bf16[8,128,128], index: 3, kind: input, shape index: {}]
  %s4 = inlined_call_operand.vmem [shape: f32[8,1,128], index: 4, kind: input, shape index: {}]
  %s5 = inlined_call_operand.hbm [shape: bf16[128,128], index: 5, kind: input, shape index: {}]
  %s6 = inlined_call_operand.vmem [shape: f32[1,128], index: 6, kind: input, shape index: {}]
  %s7 = inlined_call_operand.hbm [shape: f32[50,128], index: 7, kind: output, shape index: {}]
  %s8 = sld [smem:[#allocation0]]
  $region77: #{tpu_custom_call.1} parent=0
    _
  %s10 = ssub.s32 1, %s8
  %s11 = scalar_select 0, %s10, %s8
  $region1: #{tpu_custom_call.1} parent=0
    #allocation3 [shape = 'u8[65536]{0}', space=vmem, size = 0x10000, scoped, tag = 'input window, operand 3']
    #allocation4 [shape = 's32[2]{0}', space=sflag, size = 0x8, scoped, tag = 'scoped memory for tpu_custom_call.1']
    #allocation5 [shape = 's32[2]{0}', space=sflag, size = 0x8, scoped, tag = 'scoped memory for tpu_custom_call.1']
    #allocation6 [shape = 'u8[32768]{0}', space=vmem, size = 0x8000, scoped, tag = 'input window, operand 5, single buffered']
    #allocation7 [shape = 's32[1]{0}', space=sflag, size = 0x4, scoped, tag = 'scoped memory for tpu_custom_call.1']
    #allocation8 [shape = 'u8[32768]{0}', space=vmem, size = 0x8000, scoped, tag = 'output window, operand 0']
    %12 = vsyncpa [#allocation4], 0
    %s13 = scalar_lea.sflag [#allocation4], 1
    %14 = vsyncpa %s13, 0
    %15 = vsyncpa [#allocation7], 0
    %16 = vsyncpa [#allocation5], 0
    %s17 = scalar_lea.sflag [#allocation5], 1
    %18 = vsyncpa %s17, 0
    loop: start=0, step=1, limit=18
    $region2: #{tpu_custom_call.1} parent=1 // loop_pre_header
      _
    $region3: #{tpu_custom_call.1} parent=1 // loop_header
      %s20 = sphi 0, %s24
      %p21 = scmp.ge.s32.totalorder %s20, 18
      %s27 = sphi 0, %s39
      %s28 = sphi 0, %s35
      %s29 = sphi 0, %s27
      %s30 = sphi 0, %s28
      %s31 = sphi 0, %s29
      %s32 = sphi 0, %s30
      %s42 = sphi 0, %s44
      %s45 = sphi 0, %s42
      %s46 = sphi 0, %s45
      %s62 = sphi 0, %s46
      %s66 = sphi 0, %s66
      %s68 = sphi 0, %s66
      %s69 = sphi 0, %s68
      %s83 = sphi 0, %s69
      %s87 = sphi 0, %s87
      %s89 = sphi 0, %s87
      %s90 = sphi 0, %s89
      %s104 = sphi 0, %s90
      %s110 = sphi 0, %s112
      %s113 = sphi 0, %s110
      %s114 = sphi 0, %s113
      %s130 = sphi 0, %s114
      %s136 = sphi 0, %s138
      %s139 = sphi 0, %s136
      %s140 = sphi 0, %s139
      %s156 = sphi 0, %s140
      %s160 = sphi 0, %s160
      %s162 = sphi 0, %s160
      %s163 = sphi 0, %s162
      %s177 = sphi 0, %s163
      %s181 = sphi 0, %s181
      %s183 = sphi 0, %s181
      %s184 = sphi 0, %s183
      %s198 = sphi 0, %s184
      %s204 = sphi 0, %s206
      %s207 = sphi 0, %s204
      %s208 = sphi 0, %s207
      %s224 = sphi 0, %s208
    $region4: #{tpu_custom_call.1} parent=1 // loop_header_branch
      %23 = sbr.rel (%p21) target = $region8
    $region5: #{tpu_custom_call.1} parent=1 // loop_body
      %s25 = ssub.s32 %s20, 1
      %s26 = ssub.s32 %s20, 2
      %s33 = sadd.s32 1, %s28
      %p34 = scmp.ge.s32.totalorder %s33, 8
      %s35 = scalar_select %p34, 0, %s33
      %s36 = sadd.s32 1, %s27
      %s37 = scalar_select %p34, %s36, %s27
      %p38 = scmp.ge.s32.totalorder %s37, 2
      %s39 = scalar_select %p38, 0, %s37
      %s40 = ssub.s32 %s27, %s39
      %p41 = scmp.eq.s32.totalorder %s40, 0
      %s43 = sadd.s32 %s42, 1
      %s44 = scalar_select %p41, %s42, %s43
      %p47 = pneg %p41
      %p48 = scmp.eq.s32.totalorder %s20, 15
      %p49 = por %p47, %p48
      %p50 = scmp.ne.s32.totalorder %s42, %s45
      %p51 = scmp.eq.s32.totalorder %s20, 0
      %p52 = por %p50, %p51
      %p53 = scmp.ne.s32.totalorder %s42, %s45
      %p54 = scmp.eq.s32.totalorder %s25, 15
      %p55 = por %p53, %p54
      %p56 = scmp.ne.s32.totalorder %s45, %s46
      %p57 = scmp.eq.s32.totalorder %s25, 0
      %p58 = por %p56, %p57
      %p59 = scmp.ne.s32.totalorder %s45, %s46
      %p60 = scmp.eq.s32.totalorder %s26, 15
      %p61 = por %p59, %p60
      %p63 = scmp.ne.s32.totalorder %s46, %s62
      %p64 = scmp.eq.s32.totalorder %s26, 0
      %p65 = por %p63, %p64
      %s67 = sadd.s32 %s66, 1
      %p70 = scmp.eq.s32.totalorder %s20, 15
      %p71 = scmp.ne.s32.totalorder %s66, %s68
      %p72 = scmp.eq.s32.totalorder %s20, 0
      %p73 = por %p71, %p72
      %p74 = scmp.ne.s32.totalorder %s66, %s68
      %p75 = scmp.eq.s32.totalorder %s25, 15
      %p76 = por %p74, %p75
      %p77 = scmp.ne.s32.totalorder %s68, %s69
      %p78 = scmp.eq.s32.totalorder %s25, 0
      %p79 = por %p77, %p78
      %p80 = scmp.ne.s32.totalorder %s68, %s69
      %p81 = scmp.eq.s32.totalorder %s26, 15
      %p82 = por %p80, %p81
      %p84 = scmp.ne.s32.totalorder %s69, %s83
      %p85 = scmp.eq.s32.totalorder %s26, 0
      %p86 = por %p84, %p85
      %s88 = sadd.s32 %s87, 1
      %p91 = scmp.eq.s32.totalorder %s20, 15
      %p92 = scmp.ne.s32.totalorder %s87, %s89
      %p93 = scmp.eq.s32.totalorder %s20, 0
      %p94 = por %p92, %p93
      %p95 = scmp.ne.s32.totalorder %s87, %s89
      %p96 = scmp.eq.s32.totalorder %s25, 15
      %p97 = por %p95, %p96
      %p98 = scmp.ne.s32.totalorder %s89, %s90
      %p99 = scmp.eq.s32.totalorder %s25, 0
      %p100 = por %p98, %p99
      %p101 = scmp.ne.s32.totalorder %s89, %s90
      %p102 = scmp.eq.s32.totalorder %s26, 15
      %p103 = por %p101, %p102
      %p105 = scmp.ne.s32.totalorder %s90, %s104
      %p106 = scmp.eq.s32.totalorder %s26, 0
      %p107 = por %p105, %p106
      %s108 = ssub.s32 %s28, %s35
      %p109 = scmp.eq.s32.totalorder %s108, 0
      %s111 = sadd.s32 %s110, 1
      %s112 = scalar_select %p109, %s110, %s111
      %p115 = pneg %p109
      %p116 = scmp.eq.s32.totalorder %s20, 15
      %p117 = por %p115, %p116
      %p118 = scmp.ne.s32.totalorder %s110, %s113
      %p119 = scmp.eq.s32.totalorder %s20, 0
      %p120 = por %p118, %p119
      %p121 = scmp.ne.s32.totalorder %s110, %s113
      %p122 = scmp.eq.s32.totalorder %s25, 15
      %p123 = por %p121, %p122
      %p124 = scmp.ne.s32.totalorder %s113, %s114
      %p125 = scmp.eq.s32.totalorder %s25, 0
      %p126 = por %p124, %p125
      %p127 = scmp.ne.s32.totalorder %s113, %s114
      %p128 = scmp.eq.s32.totalorder %s26, 15
      %p129 = por %p127, %p128
      %p131 = scmp.ne.s32.totalorder %s114, %s130
      %p132 = scmp.eq.s32.totalorder %s26, 0
      %p133 = por %p131, %p132
      %s134 = ssub.s32 %s28, %s35
      %p135 = scmp.eq.s32.totalorder %s134, 0
      %s137 = sadd.s32 %s136, 1
      %s138 = scalar_select %p135, %s136, %s137
      %p141 = pneg %p135
      %p142 = scmp.eq.s32.totalorder %s20, 15
      %p143 = por %p141, %p142
      %p144 = scmp.ne.s32.totalorder %s136, %s139
      %p145 = scmp.eq.s32.totalorder %s20, 0
      %p146 = por %p144, %p145
      %p147 = scmp.ne.s32.totalorder %s136, %s139
      %p148 = scmp.eq.s32.totalorder %s25, 15
      %p149 = por %p147, %p148
      %p150 = scmp.ne.s32.totalorder %s139, %s140
      %p151 = scmp.eq.s32.totalorder %s25, 0
      %p152 = por %p150, %p151
      %p153 = scmp.ne.s32.totalorder %s139, %s140
      %p154 = scmp.eq.s32.totalorder %s26, 15
      %p155 = por %p153, %p154
      %p157 = scmp.ne.s32.totalorder %s140, %s156
      %p158 = scmp.eq.s32.totalorder %s26, 0
      %p159 = por %p157, %p158
      %s161 = sadd.s32 %s160, 1
      %p164 = scmp.eq.s32.totalorder %s20, 15
      %p165 = scmp.ne.s32.totalorder %s160, %s162
      %p166 = scmp.eq.s32.totalorder %s20, 0
      %p167 = por %p165, %p166
      %p168 = scmp.ne.s32.totalorder %s160, %s162
      %p169 = scmp.eq.s32.totalorder %s25, 15
      %p170 = por %p168, %p169
      %p171 = scmp.ne.s32.totalorder %s162, %s163
      %p172 = scmp.eq.s32.totalorder %s25, 0
      %p173 = por %p171, %p172
      %p174 = scmp.ne.s32.totalorder %s162, %s163
      %p175 = scmp.eq.s32.totalorder %s26, 15
      %p176 = por %p174, %p175
      %p178 = scmp.ne.s32.totalorder %s163, %s177
      %p179 = scmp.eq.s32.totalorder %s26, 0
      %p180 = por %p178, %p179
      %s182 = sadd.s32 %s181, 1
      %p185 = scmp.eq.s32.totalorder %s20, 15
      %p186 = scmp.ne.s32.totalorder %s181, %s183
      %p187 = scmp.eq.s32.totalorder %s20, 0
      %p188 = por %p186, %p187
      %p189 = scmp.ne.s32.totalorder %s181, %s183
      %p190 = scmp.eq.s32.totalorder %s25, 15
      %p191 = por %p189, %p190
      %p192 = scmp.ne.s32.totalorder %s183, %s184
      %p193 = scmp.eq.s32.totalorder %s25, 0
      %p194 = por %p192, %p193
      %p195 = scmp.ne.s32.totalorder %s183, %s184
      %p196 = scmp.eq.s32.totalorder %s26, 15
      %p197 = por %p195, %p196
      %p199 = scmp.ne.s32.totalorder %s184, %s198
      %p200 = scmp.eq.s32.totalorder %s26, 0
      %p201 = por %p199, %p200
      %s202 = ssub.s32 %s27, %s39
      %p203 = scmp.eq.s32.totalorder %s202, 0
      %s205 = sadd.s32 %s204, 1
      %s206 = scalar_select %p203, %s204, %s205
      %p209 = pneg %p203
      %p210 = scmp.eq.s32.totalorder %s20, 15
      %p211 = por %p209, %p210
      %p212 = scmp.ne.s32.totalorder %s204, %s207
      %p213 = scmp.eq.s32.totalorder %s20, 0
      %p214 = por %p212, %p213
      %p215 = scmp.ne.s32.totalorder %s204, %s207
      %p216 = scmp.eq.s32.totalorder %s25, 15
      %p217 = por %p215, %p216
      %p218 = scmp.ne.s32.totalorder %s207, %s208
      %p219 = scmp.eq.s32.totalorder %s25, 0
      %p220 = por %p218, %p219
      %p221 = scmp.ne.s32.totalorder %s207, %s208
      %p222 = scmp.eq.s32.totalorder %s26, 15
      %p223 = por %p221, %p222
      %p225 = scmp.ne.s32.totalorder %s208, %s224
      %p226 = scmp.eq.s32.totalorder %s26, 0
      %p227 = por %p225, %p226
      %p228 = scmp.le.s32.totalorder 1, %s20
      %p229 = scmp.lt.s32.totalorder %s20, 17
      %p230 = pnand %p228, %p229
      %p231 = pneg %p230
      // Predicated region
      $region9: #{tpu_custom_call.1} parent=5 // pred_check
        _
      $region10: #{tpu_custom_call.1} parent=5 // pred_check_branch
        %233 = sbr.rel (%p230) target = $region12
      $region11: #{tpu_custom_call.1} parent=5 // pred_region
        %s234 = ssub.s32 %s20, 1
        // Predicated region
        $region13: #{tpu_custom_call.1} parent=11 // pred_check
          %p235 = pneg %p79
        $region14: #{tpu_custom_call.1} parent=11 // pred_check_branch
          %237 = sbr.rel (%p235) target = $region16
        $region15: #{tpu_custom_call.1} parent=11 // pred_region
          _
        $region16: #{tpu_custom_call.1} parent=11 // pred_fallthru
          _
        // Predicated region
        $region17: #{tpu_custom_call.1} parent=11 // pred_check
          %p238 = pneg %p100
        $region18: #{tpu_custom_call.1} parent=11 // pred_check_branch
          %240 = sbr.rel (%p238) target = $region20
        $region19: #{tpu_custom_call.1} parent=11 // pred_region
          _
        $region20: #{tpu_custom_call.1} parent=11 // pred_fallthru
          _
        // Predicated region
        $region21: #{tpu_custom_call.1} parent=11 // pred_check
          %p241 = pneg %p173
        $region22: #{tpu_custom_call.1} parent=11 // pred_check_branch
          %243 = sbr.rel (%p241) target = $region24
        $region23: #{tpu_custom_call.1} parent=11 // pred_region
          %s245 = ssub.s32 1024, 1024
          %246 = vsyncadd [#allocation7], %s245
          %s247 = sshll.u32 [#allocation6], 4
          %s248 = int_to_ptr.vmem [resolvable:$true] %s247
          %253 = dma.hbm_to_vmem [thread:$0]  %s5, 1024, %s248, [#allocation7], 64, 64, 4
        $region24: #{tpu_custom_call.1} parent=11 // pred_fallthru
          _
        // Predicated region
        $region25: #{tpu_custom_call.1} parent=11 // pred_check
          %p254 = pneg %p194
        $region26: #{tpu_custom_call.1} parent=11 // pred_check_branch
          %256 = sbr.rel (%p254) target = $region28
        $region27: #{tpu_custom_call.1} parent=11 // pred_region
          _
        $region28: #{tpu_custom_call.1} parent=11 // pred_fallthru
          _
      $region12: #{tpu_custom_call.1} parent=5 // pred_fallthru
        _
      %p257 = scmp.lt.s32.totalorder %s20, 16
      // Predicated region
      $region29: #{tpu_custom_call.1} parent=5 // pred_check
        %p258 = pneg %p257
      $region30: #{tpu_custom_call.1} parent=5 // pred_check_branch
        %260 = sbr.rel (%p258) target = $region32
      $region31: #{tpu_custom_call.1} parent=5 // pred_region
        // Predicated region
        $region33: #{tpu_custom_call.1} parent=31 // pred_check
          %p261 = pneg %p52
        $region34: #{tpu_custom_call.1} parent=31 // pred_check_branch
          %263 = sbr.rel (%p261) target = $region36
        $region35: #{tpu_custom_call.1} parent=31 // pred_region
          %s264 = smul.u32 4, %s27
          %s265 = ssub.s32 7, %s264
          %p266 = scmp.lt.s32.totalorder %s265, 4
          %s267 = scalar_select %p266, %s265, 4
          %s268 = smul.u32 64, %s267
          %p269 = scmp.lt.s32.totalorder %s264, 6
          %s270 = scalar_select %p269, %s264, 6
          %s271 = smul.addr %s270, 4
          %s272 = scalar_lea.vmem %s0, %s271
          %s273 = smul.u32 4, %s27
          %s274 = ssub.s32 7, %s273
          %p275 = scmp.lt.s32.totalorder %s274, 4
          %s276 = scalar_select %p275, %s274, 4
          %s277 = smul.u32 64, %s276
        $region36: #{tpu_custom_call.1} parent=31 // pred_fallthru
          _
        // Predicated region
        $region37: #{tpu_custom_call.1} parent=31 // pred_check
          %p278 = pneg %p120
        $region38: #{tpu_custom_call.1} parent=31 // pred_check_branch
          %280 = sbr.rel (%p278) target = $region40
        $region39: #{tpu_custom_call.1} parent=31 // pred_region
          %s281 = sand.u32 %s110, 1
          %s282 = scalar_lea.sflag [#allocation4], %s281
          %s283 = sand.u32 %s110, 1
          %s284 = smul.addr %s283, 64
          %s285 = scalar_lea.vmem [#allocation3], %s284
          %s287 = ssub.s32 1024, 1024
          %288 = vsyncadd %s282, %s287
          %s289 = smul.addr %s28, 16
          %s290 = smul.addr %s289, 64
          %s291 = scalar_lea.hbm %s3, %s290
          %s292 = sshll.u32 %s285, 4
          %s293 = int_to_ptr.vmem [resolvable:$true] %s292
          %298 = dma.hbm_to_vmem [thread:$0]  %s291, 1024, %s293, %s282, 64, 64, 4
        $region40: #{tpu_custom_call.1} parent=31 // pred_fallthru
          _
        // Predicated region
        $region41: #{tpu_custom_call.1} parent=31 // pred_check
          %p299 = pneg %p146
        $region42: #{tpu_custom_call.1} parent=31 // pred_check_branch
          %301 = sbr.rel (%p299) target = $region44
        $region43: #{tpu_custom_call.1} parent=31 // pred_region
          %p302 = scmp.lt.s32.totalorder %s28, 7
          %s303 = scalar_select %p302, %s28, 7
          %s304 = scalar_lea.vmem %s4, %s303
        $region44: #{tpu_custom_call.1} parent=31 // pred_fallthru
          _
      $region32: #{tpu_custom_call.1} parent=5 // pred_fallthru
        _
      %p305 = scmp.le.s32.totalorder 1, %s20
      %p306 = scmp.lt.s32.totalorder %s20, 17
      %p307 = pnand %p305, %p306
      %p308 = pneg %p307
      // Predicated region
      $region45: #{tpu_custom_call.1} parent=5 // pred_check
        _
      $region46: #{tpu_custom_call.1} parent=5 // pred_check_branch
        %310 = sbr.rel (%p307) target = $region48
      $region47: #{tpu_custom_call.1} parent=5 // pred_region
        %s311 = ssub.s32 %s20, 1
        %s312 = sand.u32 %s113, 1
        %s313 = scalar_lea.sflag [#allocation4], %s312
        %s314 = sand.u32 %s113, 1
        %s315 = smul.addr %s314, 64
        %s316 = scalar_lea.vmem [#allocation3], %s315
        // Predicated region
        $region49: #{tpu_custom_call.1} parent=47 // pred_check
          %p317 = pneg %p126
        $region50: #{tpu_custom_call.1} parent=47 // pred_check_branch
          %319 = sbr.rel (%p317) target = $region52
        $region51: #{tpu_custom_call.1} parent=47 // pred_region
          %320 = dma.done %s313, 1024
        $region52: #{tpu_custom_call.1} parent=47 // pred_fallthru
          _
        // Predicated region
        $region53: #{tpu_custom_call.1} parent=47 // pred_check
          %p321 = pneg %p173
        $region54: #{tpu_custom_call.1} parent=47 // pred_check_branch
          %323 = sbr.rel (%p321) target = $region56
        $region55: #{tpu_custom_call.1} parent=47 // pred_region
          %324 = dma.done [#allocation7], 1024
        $region56: #{tpu_custom_call.1} parent=47 // pred_fallthru
          _
        %s325 = smul.u32 4, %s29
        %s326 = ssub.s32 7, %s325
        %p327 = scmp.lt.s32.totalorder %s326, 4
        %s328 = scalar_select %p327, %s326, 4
        %s329 = smul.u32 64, %s328
        %p330 = scmp.lt.s32.totalorder %s325, 6
        %s331 = scalar_select %p330, %s325, 6
        %s332 = smul.addr %s331, 4
        %s333 = scalar_lea.vmem %s0, %s332
        %p334 = pneg %p58
        %p335 = pneg %p55
        %p336 = pneg %p79
        %p337 = pneg %p76
        %p338 = pneg %p100
        %p339 = pneg %p97
        %s340 = sand.u32 %s113, 1
        %s341 = scalar_lea.sflag [#allocation4], %s340
        %s342 = sand.u32 %s113, 1
        %s343 = smul.addr %s342, 64
        %s344 = scalar_lea.vmem [#allocation3], %s343
        %p345 = pneg %p126
        %p346 = pneg %p123
        %p347 = scmp.lt.s32.totalorder %s30, 7
        %s348 = scalar_select %p347, %s30, 7
        %s349 = scalar_lea.vmem %s4, %s348
        %p350 = pneg %p152
        %p351 = pneg %p149
        %p352 = pneg %p173
        %p353 = pneg %p170
        %p354 = pneg %p194
        %p355 = pneg %p191
        %p356 = pneg %p220
        %p357 = pneg %p217
        %s358 = sand.u32 %s207, 1
        %s359 = scalar_lea.sflag [#allocation5], %s358
        %s360 = sand.u32 %s207, 1
        %s361 = smul.addr %s360, 32
        %s362 = scalar_lea.vmem [#allocation8], %s361
        %s363 = smul.u32 4, %s29
        %s364 = ssub.s32 7, %s363
        %p365 = scmp.lt.s32.totalorder %s364, 4
        %s366 = scalar_select %p365, %s364, 4
        %s367 = smul.u32 64, %s366
        %p368 = scmp.lt.s32.totalorder %s363, 6
        %s369 = scalar_select %p368, %s363, 6
        %s370 = smul.addr %s369, 4
        %s371 = scalar_lea.vmem %s0, %s370
        %s372 = smul.u32 4, %s29
        %s373 = ssub.s32 7, %s372
        %p374 = scmp.lt.s32.totalorder %s373, 4
        %s375 = scalar_select %p374, %s373, 4
        %s376 = smul.u32 64, %s375
        %p377 = scmp.lt.s32.totalorder %s30, 7
        %s378 = scalar_select %p377, %s30, 7
        %s379 = scalar_lea.vmem %s4, %s378
        %s380 = smul.u32 4, %s29
        %s381 = ssub.s32 7, %s380
        %p382 = scmp.lt.s32.totalorder %s381, 4
        %s383 = scalar_select %p382, %s381, 4
        %s384 = smul.u32 128, %s383
        %p386 = scmp.eq.s32.totalorder %s30, 0
        // Predicated region
        $region57: #{tpu_custom_call.1} parent=47 // pred_check
          %p387 = pneg %p386
        $region58: #{tpu_custom_call.1} parent=47 // pred_check_branch
          %389 = sbr.rel (%p387) target = $region60
        $region59: #{tpu_custom_call.1} parent=47 // pred_region
          %v390 = vld [vmem:[%s371] sm:$0xf]
          %v391 = vld [vmem:[%s371 + $0x4] sm:$0xf]
          %v392 = vld [vmem:[%s371 + $0x8] sm:$0xf]
          %v393 = vld [vmem:[%s371 + $0xc] sm:$0xf]
          %v394 = vld [vmem:[%s1] sm:$0xf]
          %v395 = vld [vmem:[%s1 + $0x4] sm:$0xf]
          %v396 = vld [vmem:[%s1 + $0x8] sm:$0xf]
          %v397 = vld [vmem:[%s1 + $0xc] sm:$0xf]
          %v398 = vld [vmem:[%s2] sm:$0x1]
          %v400 = vlaneseq
          %v401 = vshrl.u32 %v400, 7
          %v402 = vsub.s32 0, %v401
          %v403 = vrot.slane %v398, %v402
          %v409 = vunpack.c.l.b16 %v390
          %v410 = vunpack.c.l.b16 %v391
          %v411 = vunpack.c.l.b16 %v392
          %v412 = vunpack.c.l.b16 %v393
          %v413 = vpack.c.b16 %v410, %v409
          %v414 = vpack.c.b16 %v412, %v411
          %v419 = vunpack.c.l.b16 %v394
          %v420 = vunpack.c.l.b16 %v395
          %v421 = vunpack.c.l.b16 %v396
          %v422 = vunpack.c.l.b16 %v397
          %v423 = vpack.c.b16 %v420, %v419
          %v424 = vpack.c.b16 %v422, %v421
          %vm427 = vcmask 261120
          %v429 = vsel %vm427, %v413, 0
          %v432 = vsel %vm427, %v414, 0
          %434 = vmatprep.subr.bf16.mxu0 0
          %435 = vmatpush1.bf16.msra.mxu0 %v423
          %436 = vmatprep.subr.bf16.mxu0 0
          %437 = vmatpush1.bf16.msra.mxu0 %v424
          %438 = vmatprep.subr.bf16.mxu0 0
          %439 = vmatpush1.bf16.msra.mxu0 0
          %440 = vmatprep.subr.bf16.mxu0 0
          %441 = vmatpush1.bf16.msra.mxu0 0
          %442 = vmatprep.subr.bf16.mxu0 0
          %443 = vmatpush1.bf16.msra.mxu0 0
          %444 = vmatprep.subr.bf16.mxu0 0
          %445 = vmatpush1.bf16.msra.mxu0 0
          %446 = vmatprep.subr.bf16.mxu0 0
          %447 = vmatpush1.bf16.msra.mxu0 0
          %448 = vmatprep.subr.bf16.mxu0 0
          %449 = vmatpush1.bf16.msra.mxu0 0
          %450 = vmatprep.subr.bf16.mxu0 0
          %451 = vmatpush1.bf16.msra.mxu0 0
          %452 = vmatprep.subr.bf16.mxu0 0
          %453 = vmatpush1.bf16.msra.mxu0 0
          %454 = vmatprep.subr.bf16.mxu0 0
          %455 = vmatpush1.bf16.msra.mxu0 0
          %456 = vmatprep.subr.bf16.mxu0 0
          %457 = vmatpush1.bf16.msra.mxu0 0
          %458 = vmatprep.subr.bf16.mxu0 0
          %459 = vmatpush1.bf16.msra.mxu0 0
          %460 = vmatprep.subr.bf16.mxu0 0
          %461 = vmatpush1.bf16.msra.mxu0 0
          %462 = vmatprep.subr.bf16.mxu0 0
          %463 = vmatpush1.bf16.msra.mxu0 0
          %464 = vmatprep.subr.bf16.mxu0 0
          %465 = vmatpush1.bf16.msra.mxu0 0
          %466 = vmatprep.mubr.bf16.mxu0 0
          %467 = vmatmul.mubr.bf16.gmra.mrb[0].mxu0 %v429
          %v468 = vpop.f32.mrb[0].mxu0
          %v469 = vadd.f32 %v403, %v468
          %v470 = vpop.f32.mrb[0].mxu0
          %v471 = vpop.f32.mrb[0].mxu0
          %v472 = vadd.f32 %v403, %v471
          %v473 = vpop.f32.mrb[0].mxu0
          %474 = vmatprep.mubr.bf16.mxu0 0
          %475 = vmatmul.mubr.bf16.gmra.mrb[0].mxu0 %v432
          %v476 = vpop.f32.mrb[0].mxu0
          %v477 = vadd.f32 %v403, %v476
          %v478 = vpop.f32.mrb[0].mxu0
          %v479 = vpop.f32.mrb[0].mxu0
          %v480 = vadd.f32 %v403, %v479
          %v481 = vpop.f32.mrb[0].mxu0
          %482 = vdwg.mxu0
          %v483 = vpack.c.bf16 %v472, %v469
          %v484 = vpack.c.bf16 %v480, %v477
          %v485 = vtanh.bf16.pop %v483
          %v486 = vtanh.bf16.pop %v484
          %487 = vst [vmem:[#allocation2] sm:$0xff] %v485
          %488 = vst [vmem:[#allocation2 + $0x8] sm:$0xff] %v486
        $region60: #{tpu_custom_call.1} parent=47 // pred_fallthru
          _
        %v489 = vld [vmem:[#allocation2] sm:$0xff]
        %v490 = vld [vmem:[#allocation2 + $0x8] sm:$0xff]
        %v491 = vld [vmem:[%s316] sm:$0xf]
        %v492 = vld [vmem:[%s316 + $0x4] sm:$0xf]
        %v493 = vld [vmem:[%s316 + $0x8] sm:$0xf]
        %v494 = vld [vmem:[%s316 + $0xc] sm:$0xf]
        %v495 = vld [vmem:[%s316 + $0x10] sm:$0xf]
        %v496 = vld [vmem:[%s316 + $0x14] sm:$0xf]
        %v497 = vld [vmem:[%s316 + $0x18] sm:$0xf]
        %v498 = vld [vmem:[%s316 + $0x1c] sm:$0xf]
        %v499 = vld [vmem:[%s316 + $0x20] sm:$0xf]
        %v500 = vld [vmem:[%s316 + $0x24] sm:$0xf]
        %v501 = vld [vmem:[%s316 + $0x28] sm:$0xf]
        %v502 = vld [vmem:[%s316 + $0x2c] sm:$0xf]
        %v503 = vld [vmem:[%s316 + $0x30] sm:$0xf]
        %v504 = vld [vmem:[%s316 + $0x34] sm:$0xf]
        %v505 = vld [vmem:[%s316 + $0x38] sm:$0xf]
        %v506 = vld [vmem:[%s316 + $0x3c] sm:$0xf]
        %v507 = vld [vmem:[%s379] sm:$0x1]
        %v509 = vlaneseq
        %v510 = vshrl.u32 %v509, 7
        %v511 = vsub.s32 0, %v510
        %v512 = vrot.slane %v507, %v511
        %v530 = vunpack.c.l.b16 %v491
        %v531 = vunpack.c.l.b16 %v492
        %v532 = vunpack.c.l.b16 %v493
        %v533 = vunpack.c.l.b16 %v494
        %v534 = vunpack.c.l.b16 %v495
        %v535 = vunpack.c.l.b16 %v496
        %v536 = vunpack.c.l.b16 %v497
        %v537 = vunpack.c.l.b16 %v498
        %v538 = vunpack.c.l.b16 %v499
        %v539 = vunpack.c.l.b16 %v500
        %v540 = vunpack.c.l.b16 %v501
        %v541 = vunpack.c.l.b16 %v502
        %v542 = vunpack.c.l.b16 %v503
        %v543 = vunpack.c.l.b16 %v504
        %v544 = vunpack.c.l.b16 %v505
        %v545 = vunpack.c.l.b16 %v506
        %v546 = vpack.c.b16 %v531, %v530
        %v547 = vpack.c.b16 %v533, %v532
        %v548 = vpack.c.b16 %v535, %v534
        %v549 = vpack.c.b16 %v537, %v536
        %v550 = vpack.c.b16 %v539, %v538
        %v551 = vpack.c.b16 %v541, %v540
        %v552 = vpack.c.b16 %v543, %v542
        %v553 = vpack.c.b16 %v545, %v544
        %562 = vmatprep.subr.bf16.mxu0 0
        %563 = vmatpush1.bf16.msra.mxu0 %v546
        %564 = vmatprep.subr.bf16.mxu0 0
        %565 = vmatpush1.bf16.msra.mxu0 %v547
        %566 = vmatprep.subr.bf16.mxu0 0
        %567 = vmatpush1.bf16.msra.mxu0 %v548
        %568 = vmatprep.subr.bf16.mxu0 0
        %569 = vmatpush1.bf16.msra.mxu0 %v549
        %570 = vmatprep.subr.bf16.mxu0 0
        %571 = vmatpush1.bf16.msra.mxu0 %v550
        %572 = vmatprep.subr.bf16.mxu0 0
        %573 = vmatpush1.bf16.msra.mxu0 %v551
        %574 = vmatprep.subr.bf16.mxu0 0
        %575 = vmatpush1.bf16.msra.mxu0 %v552
        %576 = vmatprep.subr.bf16.mxu0 0
        %577 = vmatpush1.bf16.msra.mxu0 %v553
        %578 = vmatprep.subr.bf16.mxu0 0
        %579 = vmatpush1.bf16.msra.mxu0 0
        %580 = vmatprep.subr.bf16.mxu0 0
        %581 = vmatpush1.bf16.msra.mxu0 0
        %582 = vmatprep.subr.bf16.mxu0 0
        %583 = vmatpush1.bf16.msra.mxu0 0
        %584 = vmatprep.subr.bf16.mxu0 0
        %585 = vmatpush1.bf16.msra.mxu0 0
        %586 = vmatprep.subr.bf16.mxu0 0
        %587 = vmatpush1.bf16.msra.mxu0 0
        %588 = vmatprep.subr.bf16.mxu0 0
        %589 = vmatpush1.bf16.msra.mxu0 0
        %590 = vmatprep.subr.bf16.mxu0 0
        %591 = vmatpush1.bf16.msra.mxu0 0
        %592 = vmatprep.subr.bf16.mxu0 0
        %593 = vmatpush1.bf16.msra.mxu0 0
        %594 = vmatprep.mubr.bf16.mxu0 0
        %595 = vmatmul.mubr.bf16.gmra.mrb[0].mxu0 %v489
        %v596 = vpop.f32.mrb[0].mxu0
        %v597 = vadd.f32 %v512, %v596
        %v598 = vpop.f32.mrb[0].mxu0
        %v599 = vpop.f32.mrb[0].mxu0
        %v600 = vadd.f32 %v512, %v599
        %v601 = vpop.f32.mrb[0].mxu0
        %602 = vmatprep.mubr.bf16.mxu0 0
        %603 = vmatmul.mubr.bf16.gmra.mrb[0].mxu0 %v490
        %v604 = vpop.f32.mrb[0].mxu0
        %v605 = vadd.f32 %v512, %v604
        %v606 = vpop.f32.mrb[0].mxu0
        %v607 = vpop.f32.mrb[0].mxu0
        %v608 = vadd.f32 %v512, %v607
        %v609 = vpop.f32.mrb[0].mxu0
        %610 = vdwg.mxu0
        %v611 = vpack.c.bf16 %v600, %v597
        %v612 = vpack.c.bf16 %v608, %v605
        %v613 = vtanh.bf16.pop %v611
        %v614 = vtanh.bf16.pop %v612
        %615 = vst [vmem:[#allocation2] sm:$0xff] %v613
        %616 = vst [vmem:[#allocation2 + $0x8] sm:$0xff] %v614
        %p617 = scmp.eq.s32.totalorder %s30, 7
        // Predicated region
        $region61: #{tpu_custom_call.1} parent=47 // pred_check
          %p618 = pneg %p617
        $region62: #{tpu_custom_call.1} parent=47 // pred_check_branch
          %620 = sbr.rel (%p618) target = $region64
        $region63: #{tpu_custom_call.1} parent=47 // pred_region
          %v621 = vld [vmem:[#allocation2] sm:$0xff]
          %v622 = vld [vmem:[#allocation2 + $0x8] sm:$0xff]
          %v623 = vld [vmem:[#allocation6] sm:$0xf]
          %v624 = vld [vmem:[#allocation6 + $0x4] sm:$0xf]
          %v625 = vld [vmem:[#allocation6 + $0x8] sm:$0xf]
          %v626 = vld [vmem:[#allocation6 + $0xc] sm:$0xf]
          %v627 = vld [vmem:[#allocation6 + $0x10] sm:$0xf]
          %v628 = vld [vmem:[#allocation6 + $0x14] sm:$0xf]
          %v629 = vld [vmem:[#allocation6 + $0x18] sm:$0xf]
          %v630 = vld [vmem:[#allocation6 + $0x1c] sm:$0xf]
          %v631 = vld [vmem:[#allocation6 + $0x20] sm:$0xf]
          %v632 = vld [vmem:[#allocation6 + $0x24] sm:$0xf]
          %v633 = vld [vmem:[#allocation6 + $0x28] sm:$0xf]
          %v634 = vld [vmem:[#allocation6 + $0x2c] sm:$0xf]
          %v635 = vld [vmem:[#allocation6 + $0x30] sm:$0xf]
          %v636 = vld [vmem:[#allocation6 + $0x34] sm:$0xf]
          %v637 = vld [vmem:[#allocation6 + $0x38] sm:$0xf]
          %v638 = vld [vmem:[#allocation6 + $0x3c] sm:$0xf]
          %v639 = vld [vmem:[%s6] sm:$0x1]
          %v641 = vlaneseq
          %v642 = vshrl.u32 %v641, 7
          %v643 = vsub.s32 0, %v642
          %v644 = vrot.slane %v639, %v643
          %v662 = vunpack.c.l.b16 %v623
          %v663 = vunpack.c.l.b16 %v624
          %v664 = vunpack.c.l.b16 %v625
          %v665 = vunpack.c.l.b16 %v626
          %v666 = vunpack.c.l.b16 %v627
          %v667 = vunpack.c.l.b16 %v628
          %v668 = vunpack.c.l.b16 %v629
          %v669 = vunpack.c.l.b16 %v630
          %v670 = vunpack.c.l.b16 %v631
          %v671 = vunpack.c.l.b16 %v632
          %v672 = vunpack.c.l.b16 %v633
          %v673 = vunpack.c.l.b16 %v634
          %v674 = vunpack.c.l.b16 %v635
          %v675 = vunpack.c.l.b16 %v636
          %v676 = vunpack.c.l.b16 %v637
          %v677 = vunpack.c.l.b16 %v638
          %v678 = vpack.c.b16 %v663, %v662
          %v679 = vpack.c.b16 %v665, %v664
          %v680 = vpack.c.b16 %v667, %v666
          %v681 = vpack.c.b16 %v669, %v668
          %v682 = vpack.c.b16 %v671, %v670
          %v683 = vpack.c.b16 %v673, %v672
          %v684 = vpack.c.b16 %v675, %v674
          %v685 = vpack.c.b16 %v677, %v676
          %694 = vmatprep.subr.bf16.mxu0 0
          %695 = vmatpush1.bf16.msra.mxu0 %v678
          %696 = vmatprep.subr.bf16.mxu0 0
          %697 = vmatpush1.bf16.msra.mxu0 %v679
          %698 = vmatprep.subr.bf16.mxu0 0
          %699 = vmatpush1.bf16.msra.mxu0 %v680
          %700 = vmatprep.subr.bf16.mxu0 0
          %701 = vmatpush1.bf16.msra.mxu0 %v681
          %702 = vmatprep.subr.bf16.mxu0 0
          %703 = vmatpush1.bf16.msra.mxu0 %v682
          %704 = vmatprep.subr.bf16.mxu0 0
          %705 = vmatpush1.bf16.msra.mxu0 %v683
          %706 = vmatprep.subr.bf16.mxu0 0
          %707 = vmatpush1.bf16.msra.mxu0 %v684
          %708 = vmatprep.subr.bf16.mxu0 0
          %709 = vmatpush1.bf16.msra.mxu0 %v685
          %710 = vmatprep.subr.bf16.mxu0 0
          %711 = vmatpush1.bf16.msra.mxu0 0
          %712 = vmatprep.subr.bf16.mxu0 0
          %713 = vmatpush1.bf16.msra.mxu0 0
          %714 = vmatprep.subr.bf16.mxu0 0
          %715 = vmatpush1.bf16.msra.mxu0 0
          %716 = vmatprep.subr.bf16.mxu0 0
          %717 = vmatpush1.bf16.msra.mxu0 0
          %718 = vmatprep.subr.bf16.mxu0 0
          %719 = vmatpush1.bf16.msra.mxu0 0
          %720 = vmatprep.subr.bf16.mxu0 0
          %721 = vmatpush1.bf16.msra.mxu0 0
          %722 = vmatprep.subr.bf16.mxu0 0
          %723 = vmatpush1.bf16.msra.mxu0 0
          %724 = vmatprep.subr.bf16.mxu0 0
          %725 = vmatpush1.bf16.msra.mxu0 0
          %726 = vmatprep.mubr.bf16.mxu0 0
          %727 = vmatmul.mubr.bf16.gmra.mrb[0].mxu0 %v621
          %v728 = vpop.f32.mrb[0].mxu0
          %v729 = vadd.f32 %v644, %v728
          %v730 = vpop.f32.mrb[0].mxu0
          %v731 = vpop.f32.mrb[0].mxu0
          %v732 = vadd.f32 %v644, %v731
          %v733 = vpop.f32.mrb[0].mxu0
          %734 = vmatprep.mubr.bf16.mxu0 0
          %735 = vmatmul.mubr.bf16.gmra.mrb[0].mxu0 %v622
          %v736 = vpop.f32.mrb[0].mxu0
          %v737 = vadd.f32 %v644, %v736
          %v738 = vpop.f32.mrb[0].mxu0
          %v739 = vpop.f32.mrb[0].mxu0
          %v740 = vadd.f32 %v644, %v739
          %v741 = vpop.f32.mrb[0].mxu0
          %742 = vdwg.mxu0
          %743 = vst [vmem:[%s362] sm:$0xff] %v729
          %744 = vst [vmem:[%s362 + $0x8] sm:$0xff] %v732
          %745 = vst [vmem:[%s362 + $0x10] sm:$0xff] %v737
          %746 = vst [vmem:[%s362 + $0x18] sm:$0xff] %v740
        $region64: #{tpu_custom_call.1} parent=47 // pred_fallthru
          _
        %s747 = sand.u32 %s207, 1
        %s748 = scalar_lea.sflag [#allocation5], %s747
        %s749 = sand.u32 %s207, 1
        %s750 = smul.addr %s749, 32
        %s751 = scalar_lea.vmem [#allocation8], %s750
        // Predicated region
        $region65: #{tpu_custom_call.1} parent=47 // pred_check
          %p752 = pneg %p217
        $region66: #{tpu_custom_call.1} parent=47 // pred_check_branch
          %754 = sbr.rel (%p752) target = $region68
        $region67: #{tpu_custom_call.1} parent=47 // pred_region
          %s755 = smul.u32 4, %s29
          %s756 = ssub.s32 7, %s755
          %p757 = scmp.lt.s32.totalorder %s756, 4
          %s758 = scalar_select %p757, %s756, 4
          %s759 = smul.u32 128, %s758
          %s761 = ssub.s32 512, %s759
          %762 = vsyncadd %s748, %s761
          %p763 = scmp.ne.s32.totalorder 0, %s759
          %s764 = smul.addr %s755, 128
          %s765 = scalar_lea.hbm %s7, %s764
          %s766 = smul.u32 8, %s758
          %s767 = sshll.u32 %s751, 4
          %s768 = int_to_ptr.vmem [resolvable:$true] %s767
          %s769 = sshll.u32 %s766, 4
          %773 = dma.vmem_to_hbm [thread:$0]  (%p763), %s768, %s769, %s765, %s748, 128, 128, 8
        $region68: #{tpu_custom_call.1} parent=47 // pred_fallthru
          _
      $region48: #{tpu_custom_call.1} parent=5 // pred_fallthru
        _
      %p774 = scmp.le.s32.totalorder 2, %s20
      // Predicated region
      $region69: #{tpu_custom_call.1} parent=5 // pred_check
        %p775 = pneg %p774
      $region70: #{tpu_custom_call.1} parent=5 // pred_check_branch
        %777 = sbr.rel (%p775) target = $region72
      $region71: #{tpu_custom_call.1} parent=5 // pred_region
        %s778 = ssub.s32 %s20, 2
        // Predicated region
        $region73: #{tpu_custom_call.1} parent=71 // pred_check
          %p779 = pneg %p223
        $region74: #{tpu_custom_call.1} parent=71 // pred_check_branch
          %781 = sbr.rel (%p779) target = $region76
        $region75: #{tpu_custom_call.1} parent=71 // pred_region
          %s782 = sand.u32 %s208, 1
          %s783 = scalar_lea.sflag [#allocation5], %s782
          %s784 = sand.u32 %s208, 1
          %s785 = smul.addr %s784, 32
          %s786 = scalar_lea.vmem [#allocation8], %s785
          %787 = dma.done %s783, 512
        $region76: #{tpu_custom_call.1} parent=71 // pred_fallthru
          _
      $region72: #{tpu_custom_call.1} parent=5 // pred_fallthru
        _
    $region6: #{tpu_custom_call.1} parent=1 // loop_footer
      %s24 = sadd.s32 1, %s20
    $region7: #{tpu_custom_call.1} parent=1 // loop_footer_branch
      %19 = sbr.rel target = $region3
    $region8: #{tpu_custom_call.1} parent=1 // loop_exit
      _
    %788 = vsyncpa [#allocation4], 1
    %s789 = scalar_lea.sflag [#allocation4], 1
    %790 = vsyncpa %s789, 1
    %791 = vsyncpa [#allocation7], 1
    %792 = vsyncpa [#allocation5], 1
    %s793 = scalar_lea.sflag [#allocation5], 1
    %794 = vsyncpa %s793, 1

</llo_original>
